<compile_context>
chip_gen: v5e
topology: v5e:2x2
jax: 0.10.0
libtpu: 0.0.40
codegen_flags: <defaults>
</compile_context>

<pallas_src>
import functools

import jax
import jax.numpy as jnp
from jax import lax
from jax.experimental import pallas as pl
from jax.experimental.pallas import tpu as pltpu

PAD = 0            # the torch snippet references a global PAD; assume 0 (param below)
_NEG_BIG = -1.0e30  # Python float (NOT a jnp constant -> no captured-const error)


def _round_up(x, m):
    return ((x + m - 1) // m) * m


def _sg_kernel(emb_ref, wt_ref, y_ref, out_ref, m_sc, l_sc, g_sc, *, vocab_size):
    """One (batch_tile, vocab_tile) grid step.

    emb_ref : (tb, E)  bf16   embedding rows for this batch tile
    wt_ref  : (E, tv)  bf16   pre-transposed Linear weight tile
    y_ref   : (tb, C)  int32  context indices (PAD already folded to -1)
    out_ref : (tb, 1)  f32    per-row sum_c log_softmax(lin)[y_c] * valid_c
    m/l/g_sc: (tb, 1)  f32    online-softmax max / sum-exp / gathered-logit accum
    """
    kv = pl.program_id(1)
    tv = wt_ref.shape[1]

    @pl.when(kv == 0)
    def _init():
        m_sc[...] = jnp.full_like(m_sc, _NEG_BIG)
        l_sc[...] = jnp.zeros_like(l_sc)
        g_sc[...] = jnp.zeros_like(g_sc)

    # Logits for this vocab tile: bf16 operands on the MXU, f32 accumulation.
    lin = jnp.dot(emb_ref[...], wt_ref[...],
                  preferred_element_type=jnp.float32)        # (tb, tv) f32

    # (1, tv) iota row; broadcasts happen inside the compares.
    v_global = lax.broadcasted_iota(jnp.int32, (1, tv), 1) + kv * tv

    # Lane mask only when V is not tile-aligned (static, compile-time branch).
    if vocab_size % tv != 0:
        lin_m = jnp.where(v_global < vocab_size, lin, _NEG_BIG)
    else:
        lin_m = lin

    # Online log-sum-exp (f32 VPU/EUP math -- required on v5e, fine everywhere).
    m_prev = m_sc[...]
    m_new = jnp.maximum(m_prev, jnp.max(lin_m, axis=1, keepdims=True))
    l_sc[...] = (jnp.exp(m_prev - m_new) * l_sc[...]
                 + jnp.sum(jnp.exp(lin_m - m_new), axis=1, keepdims=True))
    m_sc[...] = m_new

    # torch.gather + PAD mask as a single masked multiply-reduce:
    #   cnt[b, v] = #{c : y[b, c] == v_global}   (PAD rows are -1, never match)
    y = y_ref[...]
    C = y.shape[1]
    cnt = (v_global == y[:, 0:1]).astype(jnp.float32)
    for c in range(1, C):                                    # C is small & static
        cnt = cnt + (v_global == y[:, c:c + 1]).astype(jnp.float32)
    # lin_m (not lin) so out-of-range garbage lanes stay finite; cnt==0 there.
    g_sc[...] += jnp.sum(lin_m * cnt, axis=1, keepdims=True)

    @pl.when(kv == pl.num_programs(1) - 1)
    def _finalize():
        lse = m_sc[...] + jnp.log(l_sc[...])                 # (tb, 1)
        nvalid = jnp.sum((y_ref[...] >= 0).astype(jnp.float32),
                         axis=1, keepdims=True)              # (tb, 1)
        # sum_c logp[b, y_c]*mask_c = sum_c lin[b, y_c]*mask_c - lse[b]*nvalid[b]
        out_ref[...] = g_sc[...] - lse * nvalid


def prepare_linear_weight(lin_weight):
    """One-time param prep: persistent bf16 copy, pre-transposed to (E, V).

    Do this once at parameter setup so the forward never re-casts /
    re-transposes the (V, E) weight on the hot path.
    """
    return jnp.asarray(lin_weight, jnp.bfloat16).T           # (E, V)


def sg_forward(emb_table, lin_weight_t, batch_X, batch_y, *, pad=PAD,
               batch_tile=512, vocab_tile=1024):
    """Forward pass of the torch SG module. Returns the scalar f32 loss.

    emb_table    : (V, E) f32
    lin_weight_t : (E, V) bf16  -- from prepare_linear_weight (persistent)
    batch_X      : (B,)   int32
    batch_y      : (B, C) int32
    """
    E, V = lin_weight_t.shape
    B = batch_X.shape[0]
    C = batch_y.shape[1]

    # ---- tile selection ------------------------------------------------------
    # Batch tile: multiple of 16 (bf16 packs (16,128) per vreg); as large as
    # possible so the (E, V) weight is streamed as few times as possible.
    tb = _round_up(min(B, max(batch_tile, 16)), 16)
    # Vocab tile: multiple of 256 when defaults are used (full 2x256 MXU output
    # on v6e/v7x); 128-granular otherwise; full width if V is small.
    if V <= vocab_tile:
        tv = V
    else:
        tv = max(128, (vocab_tile // 128) * 128)

    Bp = _round_up(B, tb)
    nb = Bp // tb
    nv = pl.cdiv(V, tv)

    # ---- glue: embedding row-gather + bf16 cast ------------------------------
    # TODO(synk): fuse the embedding gather into the kernel with
    # PrefetchScalarGridSpec(num_scalar_prefetch=1) + pl.Element row-gather
    # once B*E grows enough to matter.
    emb_X = emb_table[batch_X].astype(jnp.bfloat16)          # (B, E)
    # Fold the PAD mask into the indices: PAD -> -1 (never matches a vocab id).
    y = jnp.where(batch_y == pad, -1, batch_y).astype(jnp.int32)

    if Bp != B:  # pad batch: zero embeddings + -1 contexts contribute exactly 0
        emb_X = jnp.pad(emb_X, ((0, Bp - B), (0, 0)))
        y = jnp.pad(y, ((0, Bp - B), (0, 0)), constant_values=-1)

    kernel = functools.partial(_sg_kernel, vocab_size=V)

    # ---- VMEM budget: double-buffered tiles + f32 logits, 2x headroom, -------
    # clamped to fit inside v7x's 64 MiB physical VMEM.
    est_vmem = (2 * tb * E * 2 + 2 * E * tv * 2 + 2 * tb * C * 4
                + 2 * tb * 4 + 3 * tb * 4 + 2 * tb * tv * 4)
    vmem_limit = int(min(max(2 * est_vmem, 16 * 2**20), 48 * 2**20))

    row_vals = pl.pallas_call(
        kernel,
        out_shape=jax.ShapeDtypeStruct((Bp, 1), jnp.float32),
        grid_spec=pltpu.PrefetchScalarGridSpec(
            num_scalar_prefetch=0,
            grid=(nb, nv),                                    # reduction axis last
            in_specs=[
                pl.BlockSpec((tb, E), lambda bi, kv: (bi, 0)),  # emb rows
                pl.BlockSpec((E, tv), lambda bi, kv: (0, kv)),  # weight tile (E,V)
                pl.BlockSpec((tb, C), lambda bi, kv: (bi, 0)),  # context ids
            ],
            out_specs=pl.BlockSpec((tb, 1), lambda bi, kv: (bi, 0)),
            scratch_shapes=[pltpu.VMEM((tb, 1), jnp.float32)] * 3,
        ),
        compiler_params=pltpu.CompilerParams(
            dimension_semantics=("parallel", "arbitrary"),
            vmem_limit_bytes=vmem_limit,
        ),
    )(emb_X, lin_weight_t, y)

    # Tiny epilogue: -mean over the ORIGINAL batch (padded rows are exactly 0).
    return -jnp.sum(row_vals) / jnp.float32(B)


def sg_reference(emb_table, lin_weight, batch_X, batch_y, *, pad=PAD):
    """Pure-JAX reference with matching numerics (bf16 matmul, f32 accumulate)."""
    emb_X = emb_table[batch_X].astype(jnp.bfloat16)
    lin_X = lax.dot_general(emb_X, lin_weight.astype(jnp.bfloat16),
                            dimension_numbers=(((1,), (1,)), ((), ())),
                            preferred_element_type=jnp.float32)
    logp = jax.nn.log_softmax(lin_X, axis=-1)
    gathered = jnp.take_along_axis(logp, batch_y, axis=1)
    gathered = jnp.where(batch_y != pad, gathered, 0.0)
    return -jnp.mean(jnp.sum(gathered, axis=1))


if __name__ == "__main__":
    vocab_size = 320           # NOT a multiple of the vocab tile -> exercises masking
    embedding_size = 32
    B, C = 48, 4               # B not a multiple of the batch tile -> exercises padding

    key = jax.random.PRNGKey(0)
    k_emb, k_w, k_x, k_y = jax.random.split(key, 4)

    # Deterministic synthetic parameters (nn.Embedding ~ N(0,1); nn.Linear ~ U).
    emb_table = jax.random.normal(k_emb, (vocab_size, embedding_size), jnp.float32)
    lin_weight = (jax.random.uniform(k_w, (vocab_size, embedding_size), jnp.float32)
                  - 0.5) * (2.0 / jnp.sqrt(embedding_size))

    batch_X = jax.random.randint(k_x, (B,), 0, vocab_size, jnp.int32)
    batch_y = jax.random.randint(k_y, (B, C), 0, vocab_size, jnp.int32)

    # One-time param prep (persistent bf16, pre-transposed) -- NOT in the hot path.
    lin_weight_t = jax.block_until_ready(prepare_linear_weight(lin_weight))

    # Small tiles so the example actually exercises a 2x3 grid pipeline,
    # batch padding, and the unaligned-vocab lane mask.
    loss = jax.block_until_ready(
        sg_forward(emb_table, lin_weight_t, batch_X, batch_y,
                   batch_tile=32, vocab_tile=128))
    ref = jax.block_until_ready(
        sg_reference(emb_table, lin_weight, batch_X, batch_y))

    assert jnp.allclose(loss, ref, rtol=2e-3, atol=2e-3), (loss, ref)
    print("KERNEL_OK")
</pallas_src>

<mosaic_0001>
module attributes {stable_mosaic.version = 11 : i64} {
  func.func @_sg_kernel(%arg0: i32, %arg1: i32, %arg2: memref<32x32xbf16, #tpu.memory_space<vmem>>, %arg3: memref<32x128xbf16, #tpu.memory_space<vmem>>, %arg4: memref<32x4xi32, #tpu.memory_space<vmem>>, %arg5: memref<32x1xf32, #tpu.memory_space<vmem>>, %arg6: memref<32x1xf32, #tpu.memory_space<vmem>>, %arg7: memref<32x1xf32, #tpu.memory_space<vmem>>, %arg8: memref<32x1xf32, #tpu.memory_space<vmem>>) attributes {dimension_semantics = [#tpu.dimension_semantics<parallel>, #tpu.dimension_semantics<arbitrary>], iteration_bounds = array<i64: 2, 3>, scalar_prefetch = 0 : i64, scratch_operands = 3 : i64, tpu.core_type = #tpu.core_type<tc>, window_params = [{transform_indices = @transform_0, window_bounds = array<i64: 32, 32>}, {transform_indices = @transform_1, window_bounds = array<i64: 32, 128>}, {transform_indices = @transform_2, window_bounds = array<i64: 32, 4>}, {transform_indices = @transform_3, window_bounds = array<i64: 32, 1>}]} {
    %c0_i32 = arith.constant 0 : i32
    %0 = arith.cmpi eq, %arg1, %c0_i32 : i32
    %1 = arith.extui %0 : i1 to i32
    %c0_i32_0 = arith.constant 0 : i32
    %2 = arith.cmpi ne, %1, %c0_i32_0 : i32
    scf.if %2 {
      %cst_23 = arith.constant -1.000000e+30 : f32
      %69 = vector.broadcast %cst_23 : f32 to vector<32x1xf32>
      %c0_24 = arith.constant 0 : index
      %c0_25 = arith.constant 0 : index
      %70 = vector.load %arg6[%c0_24, %c0_25] : memref<32x1xf32, #tpu.memory_space<vmem>>, vector<32x1xf32>
      tpu.vector_store %arg6[%c0_24, %c0_25], %69 {strides = array<i32>} : memref<32x1xf32, #tpu.memory_space<vmem>>, vector<32x1xf32>,
      %cst_26 = arith.constant 0.000000e+00 : f32
      %71 = vector.broadcast %cst_26 : f32 to vector<32x1xf32>
      %c0_27 = arith.constant 0 : index
      %c0_28 = arith.constant 0 : index
      %72 = vector.load %arg7[%c0_27, %c0_28] : memref<32x1xf32, #tpu.memory_space<vmem>>, vector<32x1xf32>
      tpu.vector_store %arg7[%c0_27, %c0_28], %71 {strides = array<i32>} : memref<32x1xf32, #tpu.memory_space<vmem>>, vector<32x1xf32>,
      %cst_29 = arith.constant 0.000000e+00 : f32
      %73 = vector.broadcast %cst_29 : f32 to vector<32x1xf32>
      %c0_30 = arith.constant 0 : index
      %c0_31 = arith.constant 0 : index
      %74 = vector.load %arg8[%c0_30, %c0_31] : memref<32x1xf32, #tpu.memory_space<vmem>>, vector<32x1xf32>
      tpu.vector_store %arg8[%c0_30, %c0_31], %73 {strides = array<i32>} : memref<32x1xf32, #tpu.memory_space<vmem>>, vector<32x1xf32>,
    } else {
    }
    %c0 = arith.constant 0 : index
    %c0_1 = arith.constant 0 : index
    %3 = vector.load %arg2[%c0, %c0_1] : memref<32x32xbf16, #tpu.memory_space<vmem>>, vector<32x32xbf16>
    %c0_2 = arith.constant 0 : index
    %c0_3 = arith.constant 0 : index
    %4 = vector.load %arg3[%c0_2, %c0_3] : memref<32x128xbf16, #tpu.memory_space<vmem>>, vector<32x128xbf16>
    %cst = arith.constant dense<0.000000e+00> : vector<32x128xf32>
    %5 = tpu.matmul %3, %4, %cst {dimension_numbers = #tpu.dot_dimension_numbers<[1], [0], [0], [1], [0, 0, 1, 1], [], []>} : vector<32x32xbf16>, vector<32x128xbf16>, vector<32x128xf32> -> vector<32x128xf32>
    %6 = tpu.iota {dimensions = array<i32: 1>} : vector<1x128xi32>
    %c128_i32 = arith.constant 128 : i32
    %7 = arith.muli %arg1, %c128_i32 : i32
    %8 = vector.broadcast %7 : i32 to vector<1x128xi32>
    %9 = arith.addi %6, %8 : vector<1x128xi32>
    %c320_i32 = arith.constant 320 : i32
    %10 = vector.broadcast %c320_i32 : i32 to vector<1x128xi32>
    %11 = arith.cmpi slt, %9, %10 : vector<1x128xi32>
    %cst_4 = arith.constant -1.000000e+30 : f32
    %12 = vector.shape_cast %11 : vector<1x128xi1> to vector<1x128xi1>
    %13 = vector.broadcast %12 : vector<1x128xi1> to vector<32x128xi1>
    %14 = vector.broadcast %cst_4 : f32 to vector<32x128xf32>
    %15 = arith.select %13, %5, %14 : vector<32x128xi1>, vector<32x128xf32>
    %c0_5 = arith.constant 0 : index
    %c0_6 = arith.constant 0 : index
    %16 = vector.load %arg6[%c0_5, %c0_6] : memref<32x1xf32, #tpu.memory_space<vmem>>, vector<32x1xf32>
    %cst_7 = arith.constant dense<0xFF800000> : vector<32xf32>
    %17 = vector.multi_reduction <maximumf>, %15, %cst_7 [1] : vector<32x128xf32> to vector<32xf32>
    %18 = vector.shape_cast %17 : vector<32xf32> to vector<32x1xf32>
    %19 = arith.maximumf %16, %18 : vector<32x1xf32>
    %20 = arith.subf %16, %19 : vector<32x1xf32>
    %21 = math.exp %20 : vector<32x1xf32>
    %c0_8 = arith.constant 0 : index
    %c0_9 = arith.constant 0 : index
    %22 = vector.load %arg7[%c0_8, %c0_9] : memref<32x1xf32, #tpu.memory_space<vmem>>, vector<32x1xf32>
    %23 = arith.mulf %21, %22 : vector<32x1xf32>
    %24 = vector.broadcast %19 : vector<32x1xf32> to vector<32x128xf32>
    %25 = arith.subf %15, %24 : vector<32x128xf32>
    %26 = math.exp %25 : vector<32x128xf32>
    %cst_10 = arith.constant dense<0.000000e+00> : vector<32xf32>
    %27 = vector.multi_reduction <add>, %26, %cst_10 [1] : vector<32x128xf32> to vector<32xf32>
    %28 = vector.shape_cast %27 : vector<32xf32> to vector<32x1xf32>
    %29 = arith.addf %23, %28 : vector<32x1xf32>
    %c0_11 = arith.constant 0 : index
    %c0_12 = arith.constant 0 : index
    %30 = vector.load %arg7[%c0_11, %c0_12] : memref<32x1xf32, #tpu.memory_space<vmem>>, vector<32x1xf32>
    tpu.vector_store %arg7[%c0_11, %c0_12], %29 {strides = array<i32>} : memref<32x1xf32, #tpu.memory_space<vmem>>, vector<32x1xf32>,
    %c0_13 = arith.constant 0 : index
    %c0_14 = arith.constant 0 : index
    %31 = vector.load %arg6[%c0_13, %c0_14] : memref<32x1xf32, #tpu.memory_space<vmem>>, vector<32x1xf32>
    tpu.vector_store %arg6[%c0_13, %c0_14], %19 {strides = array<i32>} : memref<32x1xf32, #tpu.memory_space<vmem>>, vector<32x1xf32>,
    %c0_15 = arith.constant 0 : index
    %c0_16 = arith.constant 0 : index
    %32 = vector.load %arg4[%c0_15, %c0_16] : memref<32x4xi32, #tpu.memory_space<vmem>>, vector<32x4xi32>
    %33 = vector.extract_strided_slice %32 {offsets = [0, 0], sizes = [32, 1], strides = [1, 1]} : vector<32x4xi32> to vector<32x1xi32>
    %34 = vector.broadcast %9 : vector<1x128xi32> to vector<32x128xi32>
    %35 = vector.broadcast %33 : vector<32x1xi32> to vector<32x128xi32>
    %36 = arith.cmpi eq, %34, %35 : vector<32x128xi32>
    %37 = arith.extui %36 : vector<32x128xi1> to vector<32x128xi32>
    %38 = arith.sitofp %37 : vector<32x128xi32> to vector<32x128xf32>
    %39 = vector.extract_strided_slice %32 {offsets = [0, 1], sizes = [32, 1], strides = [1, 1]} : vector<32x4xi32> to vector<32x1xi32>
    %40 = vector.broadcast %9 : vector<1x128xi32> to vector<32x128xi32>
    %41 = vector.broadcast %39 : vector<32x1xi32> to vector<32x128xi32>
    %42 = arith.cmpi eq, %40, %41 : vector<32x128xi32>
    %43 = arith.extui %42 : vector<32x128xi1> to vector<32x128xi32>
    %44 = arith.sitofp %43 : vector<32x128xi32> to vector<32x128xf32>
    %45 = arith.addf %38, %44 : vector<32x128xf32>
    %46 = vector.extract_strided_slice %32 {offsets = [0, 2], sizes = [32, 1], strides = [1, 1]} : vector<32x4xi32> to vector<32x1xi32>
    %47 = vector.broadcast %9 : vector<1x128xi32> to vector<32x128xi32>
    %48 = vector.broadcast %46 : vector<32x1xi32> to vector<32x128xi32>
    %49 = arith.cmpi eq, %47, %48 : vector<32x128xi32>
    %50 = arith.extui %49 : vector<32x128xi1> to vector<32x128xi32>
    %51 = arith.sitofp %50 : vector<32x128xi32> to vector<32x128xf32>
    %52 = arith.addf %45, %51 : vector<32x128xf32>
    %53 = vector.extract_strided_slice %32 {offsets = [0, 3], sizes = [32, 1], strides = [1, 1]} : vector<32x4xi32> to vector<32x1xi32>
    %54 = vector.broadcast %9 : vector<1x128xi32> to vector<32x128xi32>
    %55 = vector.broadcast %53 : vector<32x1xi32> to vector<32x128xi32>
    %56 = arith.cmpi eq, %54, %55 : vector<32x128xi32>
    %57 = arith.extui %56 : vector<32x128xi1> to vector<32x128xi32>
    %58 = arith.sitofp %57 : vector<32x128xi32> to vector<32x128xf32>
    %59 = arith.addf %52, %58 : vector<32x128xf32>
    %c0_17 = arith.constant 0 : index
    %c0_18 = arith.constant 0 : index
    %60 = vector.load %arg8[%c0_17, %c0_18] : memref<32x1xf32, #tpu.memory_space<vmem>>, vector<32x1xf32>
    %61 = arith.mulf %15, %59 : vector<32x128xf32>
    %cst_19 = arith.constant dense<0.000000e+00> : vector<32xf32>
    %62 = vector.multi_reduction <add>, %61, %cst_19 [1] : vector<32x128xf32> to vector<32xf32>
    %63 = vector.shape_cast %62 : vector<32xf32> to vector<32x1xf32>
    %64 = arith.addf %60, %63 : vector<32x1xf32>
    %c0_20 = arith.constant 0 : index
    %c0_21 = arith.constant 0 : index
    %65 = vector.load %arg8[%c0_20, %c0_21] : memref<32x1xf32, #tpu.memory_space<vmem>>, vector<32x1xf32>
    tpu.vector_store %arg8[%c0_20, %c0_21], %64 {strides = array<i32>} : memref<32x1xf32, #tpu.memory_space<vmem>>, vector<32x1xf32>,
    %c2_i32 = arith.constant 2 : i32
    %66 = arith.cmpi eq, %arg1, %c2_i32 : i32
    %67 = arith.extui %66 : i1 to i32
    %c0_i32_22 = arith.constant 0 : i32
    %68 = arith.cmpi ne, %67, %c0_i32_22 : i32
    scf.if %68 {
      %c0_23 = arith.constant 0 : index
      %c0_24 = arith.constant 0 : index
      %69 = vector.load %arg6[%c0_23, %c0_24] : memref<32x1xf32, #tpu.memory_space<vmem>>, vector<32x1xf32>
      %c0_25 = arith.constant 0 : index
      %c0_26 = arith.constant 0 : index
      %70 = vector.load %arg7[%c0_25, %c0_26] : memref<32x1xf32, #tpu.memory_space<vmem>>, vector<32x1xf32>
      %71 = math.log %70 : vector<32x1xf32>
      %72 = arith.addf %69, %71 : vector<32x1xf32>
      %c0_27 = arith.constant 0 : index
      %c0_28 = arith.constant 0 : index
      %73 = vector.load %arg4[%c0_27, %c0_28] : memref<32x4xi32, #tpu.memory_space<vmem>>, vector<32x4xi32>
      %c0_i32_29 = arith.constant 0 : i32
      %74 = vector.broadcast %c0_i32_29 : i32 to vector<32x4xi32>
      %75 = arith.cmpi sge, %73, %74 : vector<32x4xi32>
      %76 = arith.extui %75 : vector<32x4xi1> to vector<32x4xi32>
      %77 = arith.sitofp %76 : vector<32x4xi32> to vector<32x4xf32>
      %cst_30 = arith.constant dense<0.000000e+00> : vector<32xf32>
      %78 = vector.multi_reduction <add>, %77, %cst_30 [1] : vector<32x4xf32> to vector<32xf32>
      %79 = vector.shape_cast %78 : vector<32xf32> to vector<32x1xf32>
      %c0_31 = arith.constant 0 : index
      %c0_32 = arith.constant 0 : index
      %80 = vector.load %arg8[%c0_31, %c0_32] : memref<32x1xf32, #tpu.memory_space<vmem>>, vector<32x1xf32>
      %81 = arith.mulf %72, %79 : vector<32x1xf32>
      %82 = arith.subf %80, %81 : vector<32x1xf32>
      %c0_33 = arith.constant 0 : index
      %c0_34 = arith.constant 0 : index
      %83 = vector.load %arg5[%c0_33, %c0_34] : memref<32x1xf32, #tpu.memory_space<vmem>>, vector<32x1xf32>
      tpu.vector_store %arg5[%c0_33, %c0_34], %82 {strides = array<i32>} : memref<32x1xf32, #tpu.memory_space<vmem>>, vector<32x1xf32>,
    } else {
    }
    return
  }
  func.func @transform_0(%arg0: i32, %arg1: i32) -> (i32, i32) {
    %c0_i32 = arith.constant 0 : i32
    %c0_i32_0 = arith.constant 0 : i32
    return %arg0, %c0_i32 : i32, i32
  }
  func.func @transform_1(%arg0: i32, %arg1: i32) -> (i32, i32) {
    %c0_i32 = arith.constant 0 : i32
    %c0_i32_0 = arith.constant 0 : i32
    return %c0_i32, %arg1 : i32, i32
  }
  func.func @transform_2(%arg0: i32, %arg1: i32) -> (i32, i32) {
    %c0_i32 = arith.constant 0 : i32
    %c0_i32_0 = arith.constant 0 : i32
    return %arg0, %c0_i32 : i32, i32
  }
  func.func @transform_3(%arg0: i32, %arg1: i32) -> (i32, i32) {
    %c0_i32 = arith.constant 0 : i32
    %c0_i32_0 = arith.constant 0 : i32
    return %arg0, %c0_i32 : i32, i32
  }
}

</mosaic_0001>

<llo_original>
// kernel: tpu_custom_call.1
$region0: #{tpu_custom_call.1}
  #allocation0 [shape = 'u32[]', space=smem, size = 0x4, offset = 0x4, fixed_abs, tag = 'smem constant byte address 0x4 - core index']
  #allocation1 [shape = 'u32[72,128]{1,0:T(1,128)}', space=vmem, size = 0x9000, scoped, tag = 'internal scratch']
  #allocation2 [shape = 'f32[32,1]{1,0:T(8,128)}', space=vmem, size = 0x4000, scoped, tag = 'scratch operand']
  #allocation3 [shape = 'f32[32,1]{1,0:T(8,128)}', space=vmem, size = 0x4000, scoped, tag = 'scratch operand']
  #allocation4 [shape = 'f32[32,1]{1,0:T(8,128)}', space=vmem, size = 0x4000, scoped, tag = 'scratch operand']
  %s0 = inlined_call_operand.vmem [shape: bf16[64,32], index: 0, kind: input, shape index: {}]
  %s1 = inlined_call_operand.vmem [shape: bf16[32,320], index: 1, kind: input, shape index: {}]
  %s2 = inlined_call_operand.vmem [shape: s32[64,4], index: 2, kind: input, shape index: {}]
  %s3 = inlined_call_operand.vmem [shape: f32[64,1], index: 3, kind: output, shape index: {}]
  %s4 = sld [smem:[#allocation0]]
  $region94: #{tpu_custom_call.1} parent=0
    _
  %s6 = ssub.s32 1, %s4
  %s7 = scalar_select 0, %s6, %s4
  $region1: #{tpu_custom_call.1} parent=0
    #allocation5 [shape = 'u8[16384]{0}', space=vmem, size = 0x4000, scoped, tag = 'input window, operand 1']
    loop: start=0, step=1, limit=8
    $region2: #{tpu_custom_call.1} parent=1 // loop_pre_header
      _
    $region3: #{tpu_custom_call.1} parent=1 // loop_header
      %s9 = sphi 0, %s13
      %p10 = scmp.ge.s32.totalorder %s9, 8
      %s16 = sphi 0, %s28
      %s17 = sphi 0, %s24
      %s18 = sphi 0, %s16
      %s19 = sphi 0, %s17
      %s20 = sphi 0, %s18
      %s21 = sphi 0, %s19
      %s31 = sphi 0, %s33
      %s34 = sphi 0, %s31
      %s35 = sphi 0, %s34
      %s51 = sphi 0, %s35
      %s57 = sphi 0, %s59
      %s60 = sphi 0, %s57
      %s61 = sphi 0, %s60
      %s77 = sphi 0, %s61
      %s83 = sphi 0, %s85
      %s86 = sphi 0, %s83
      %s87 = sphi 0, %s86
      %s103 = sphi 0, %s87
      %s109 = sphi 0, %s111
      %s112 = sphi 0, %s109
      %s113 = sphi 0, %s112
      %s129 = sphi 0, %s113
    $region4: #{tpu_custom_call.1} parent=1 // loop_header_branch
      %12 = sbr.rel (%p10) target = $region8
    $region5: #{tpu_custom_call.1} parent=1 // loop_body
      %s14 = ssub.s32 %s9, 1
      %s15 = ssub.s32 %s9, 2
      %s22 = sadd.s32 1, %s17
      %p23 = scmp.ge.s32.totalorder %s22, 3
      %s24 = scalar_select %p23, 0, %s22
      %s25 = sadd.s32 1, %s16
      %s26 = scalar_select %p23, %s25, %s16
      %p27 = scmp.ge.s32.totalorder %s26, 2
      %s28 = scalar_select %p27, 0, %s26
      %s29 = ssub.s32 %s16, %s28
      %p30 = scmp.eq.s32.totalorder %s29, 0
      %s32 = sadd.s32 %s31, 1
      %s33 = scalar_select %p30, %s31, %s32
      %p36 = pneg %p30
      %p37 = scmp.eq.s32.totalorder %s9, 5
      %p38 = por %p36, %p37
      %p39 = scmp.ne.s32.totalorder %s31, %s34
      %p40 = scmp.eq.s32.totalorder %s9, 0
      %p41 = por %p39, %p40
      %p42 = scmp.ne.s32.totalorder %s31, %s34
      %p43 = scmp.eq.s32.totalorder %s14, 5
      %p44 = por %p42, %p43
      %p45 = scmp.ne.s32.totalorder %s34, %s35
      %p46 = scmp.eq.s32.totalorder %s14, 0
      %p47 = por %p45, %p46
      %p48 = scmp.ne.s32.totalorder %s34, %s35
      %p49 = scmp.eq.s32.totalorder %s15, 5
      %p50 = por %p48, %p49
      %p52 = scmp.ne.s32.totalorder %s35, %s51
      %p53 = scmp.eq.s32.totalorder %s15, 0
      %p54 = por %p52, %p53
      %s55 = ssub.s32 %s17, %s24
      %p56 = scmp.eq.s32.totalorder %s55, 0
      %s58 = sadd.s32 %s57, 1
      %s59 = scalar_select %p56, %s57, %s58
      %p62 = pneg %p56
      %p63 = scmp.eq.s32.totalorder %s9, 5
      %p64 = por %p62, %p63
      %p65 = scmp.ne.s32.totalorder %s57, %s60
      %p66 = scmp.eq.s32.totalorder %s9, 0
      %p67 = por %p65, %p66
      %p68 = scmp.ne.s32.totalorder %s57, %s60
      %p69 = scmp.eq.s32.totalorder %s14, 5
      %p70 = por %p68, %p69
      %p71 = scmp.ne.s32.totalorder %s60, %s61
      %p72 = scmp.eq.s32.totalorder %s14, 0
      %p73 = por %p71, %p72
      %p74 = scmp.ne.s32.totalorder %s60, %s61
      %p75 = scmp.eq.s32.totalorder %s15, 5
      %p76 = por %p74, %p75
      %p78 = scmp.ne.s32.totalorder %s61, %s77
      %p79 = scmp.eq.s32.totalorder %s15, 0
      %p80 = por %p78, %p79
      %s81 = ssub.s32 %s16, %s28
      %p82 = scmp.eq.s32.totalorder %s81, 0
      %s84 = sadd.s32 %s83, 1
      %s85 = scalar_select %p82, %s83, %s84
      %p88 = pneg %p82
      %p89 = scmp.eq.s32.totalorder %s9, 5
      %p90 = por %p88, %p89
      %p91 = scmp.ne.s32.totalorder %s83, %s86
      %p92 = scmp.eq.s32.totalorder %s9, 0
      %p93 = por %p91, %p92
      %p94 = scmp.ne.s32.totalorder %s83, %s86
      %p95 = scmp.eq.s32.totalorder %s14, 5
      %p96 = por %p94, %p95
      %p97 = scmp.ne.s32.totalorder %s86, %s87
      %p98 = scmp.eq.s32.totalorder %s14, 0
      %p99 = por %p97, %p98
      %p100 = scmp.ne.s32.totalorder %s86, %s87
      %p101 = scmp.eq.s32.totalorder %s15, 5
      %p102 = por %p100, %p101
      %p104 = scmp.ne.s32.totalorder %s87, %s103
      %p105 = scmp.eq.s32.totalorder %s15, 0
      %p106 = por %p104, %p105
      %s107 = ssub.s32 %s16, %s28
      %p108 = scmp.eq.s32.totalorder %s107, 0
      %s110 = sadd.s32 %s109, 1
      %s111 = scalar_select %p108, %s109, %s110
      %p114 = pneg %p108
      %p115 = scmp.eq.s32.totalorder %s9, 5
      %p116 = por %p114, %p115
      %p117 = scmp.ne.s32.totalorder %s109, %s112
      %p118 = scmp.eq.s32.totalorder %s9, 0
      %p119 = por %p117, %p118
      %p120 = scmp.ne.s32.totalorder %s109, %s112
      %p121 = scmp.eq.s32.totalorder %s14, 5
      %p122 = por %p120, %p121
      %p123 = scmp.ne.s32.totalorder %s112, %s113
      %p124 = scmp.eq.s32.totalorder %s14, 0
      %p125 = por %p123, %p124
      %p126 = scmp.ne.s32.totalorder %s112, %s113
      %p127 = scmp.eq.s32.totalorder %s15, 5
      %p128 = por %p126, %p127
      %p130 = scmp.ne.s32.totalorder %s113, %s129
      %p131 = scmp.eq.s32.totalorder %s15, 0
      %p132 = por %p130, %p131
      %p133 = scmp.le.s32.totalorder 1, %s9
      %p134 = scmp.lt.s32.totalorder %s9, 7
      %p135 = pnand %p133, %p134
      %p136 = pneg %p135
      // Predicated region
      $region9: #{tpu_custom_call.1} parent=5 // pred_check
        _
      $region10: #{tpu_custom_call.1} parent=5 // pred_check_branch
        %138 = sbr.rel (%p135) target = $region12
      $region11: #{tpu_custom_call.1} parent=5 // pred_region
        %s139 = ssub.s32 %s9, 1
      $region12: #{tpu_custom_call.1} parent=5 // pred_fallthru
        _
      %p140 = scmp.lt.s32.totalorder %s9, 6
      // Predicated region
      $region13: #{tpu_custom_call.1} parent=5 // pred_check
        %p141 = pneg %p140
      $region14: #{tpu_custom_call.1} parent=5 // pred_check_branch
        %143 = sbr.rel (%p141) target = $region16
      $region15: #{tpu_custom_call.1} parent=5 // pred_region
        // Predicated region
        $region17: #{tpu_custom_call.1} parent=15 // pred_check
          %p144 = pneg %p41
        $region18: #{tpu_custom_call.1} parent=15 // pred_check_branch
          %146 = sbr.rel (%p144) target = $region20
        $region19: #{tpu_custom_call.1} parent=15 // pred_region
          %s147 = smul.u32 4, %s16
          %p148 = scmp.lt.s32.totalorder %s147, 7
          %s149 = scalar_select %p148, %s147, 7
          %s150 = smul.addr %s149, 4
          %s151 = scalar_lea.vmem %s0, %s150
          %s152 = smul.u32 4, %s16
        $region20: #{tpu_custom_call.1} parent=15 // pred_fallthru
          _
        // Predicated region
        $region21: #{tpu_custom_call.1} parent=15 // pred_check
          %p153 = pneg %p67
        $region22: #{tpu_custom_call.1} parent=15 // pred_check_branch
          %155 = sbr.rel (%p153) target = $region24
        $region23: #{tpu_custom_call.1} parent=15 // pred_region
          %s156 = sand.u32 %s57, 1
          %s157 = sand.u32 %s57, 1
          %s158 = smul.addr %s157, 16
          %s159 = scalar_lea.vmem [#allocation5], %s158
          %s160 = smul.addr %s17, 4
          %s161 = scalar_lea.vmem %s1, %s160
          // Predicated region
          $region25: #{tpu_custom_call.1} parent=23 // pred_check
            _
          $region26: #{tpu_custom_call.1} parent=23 // pred_check_branch
            %163 = sbr.rel (0) target = $region28
          $region27: #{tpu_custom_call.1} parent=23 // pred_region
            // Predicated region
            $region29: #{tpu_custom_call.1} parent=27 // pred_check
              _
            $region30: #{tpu_custom_call.1} parent=27 // pred_check_branch
              %165 = sbr.rel target = $region32
            $region31: #{tpu_custom_call.1} parent=27 // pred_region
              // Predicated region
              $region44: #{tpu_custom_call.1} parent=31 // pred_check
                _
              $region45: #{tpu_custom_call.1} parent=31 // pred_check_branch
                %187 = sbr.rel (0) target = $region47
              $region46: #{tpu_custom_call.1} parent=31 // pred_region
                loop: start=0, step=1, limit=1
                $region48: #{tpu_custom_call.1} parent=46 // loop_pre_header
                  _
                $region49: #{tpu_custom_call.1} parent=46 // loop_header
                  %s189 = sphi 0, %s193
                  %p190 = scmp.ge.s32.totalorder %s189, 1
                  %s194 = sphi %s161, %s161
                  %s195 = sphi %s159, %s159
                $region50: #{tpu_custom_call.1} parent=46 // loop_header_branch
                  %192 = sbr.rel (%p190) target = $region54
                $region51: #{tpu_custom_call.1} parent=46 // loop_body
                  _
                $region52: #{tpu_custom_call.1} parent=46 // loop_footer
                  %s193 = sadd.s32 1, %s189
                $region53: #{tpu_custom_call.1} parent=46 // loop_footer_branch
                  %188 = sbr.rel target = $region49
                $region54: #{tpu_custom_call.1} parent=46 // loop_exit
                  _
                %s197 = ssub.s32 16, 1
                loop: start=0, step=1, limit=1
                $region55: #{tpu_custom_call.1} parent=46 // loop_pre_header
                  _
                $region56: #{tpu_custom_call.1} parent=46 // loop_header
                  %s199 = sphi 0, %s203
                  %p200 = scmp.ge.s32.totalorder %s199, 1
                  %s204 = sphi %s161, %s161
                  %s205 = sphi %s159, %s159
                $region57: #{tpu_custom_call.1} parent=46 // loop_header_branch
                  %202 = sbr.rel (%p200) target = $region61
                $region58: #{tpu_custom_call.1} parent=46 // loop_body
                  %v206 = vld [vmem:[%s204] sm:%s197]
                  %207 = vst [vmem:[%s205] sm:%s197] %v206
                  %v208 = vld [vmem:[%s204 + $0xc] sm:%s197]
                  %209 = vst [vmem:[%s205 + $0x4] sm:%s197] %v208
                  %v210 = vld [vmem:[%s204 + $0x18] sm:%s197]
                  %211 = vst [vmem:[%s205 + $0x8] sm:%s197] %v210
                  %v212 = vld [vmem:[%s204 + $0x24] sm:%s197]
                  %213 = vst [vmem:[%s205 + $0xc] sm:%s197] %v212
                $region59: #{tpu_custom_call.1} parent=46 // loop_footer
                  %s203 = sadd.s32 1, %s199
                $region60: #{tpu_custom_call.1} parent=46 // loop_footer_branch
                  %198 = sbr.rel target = $region56
                $region61: #{tpu_custom_call.1} parent=46 // loop_exit
                  _
              $region47: #{tpu_custom_call.1} parent=31 // pred_fallthru
                _
            $region32: #{tpu_custom_call.1} parent=27 // pred_fallthru
              _
            // Predicated region
            $region33: #{tpu_custom_call.1} parent=27 // pred_check
              _
            $region34: #{tpu_custom_call.1} parent=27 // pred_check_branch
              %167 = sbr.rel (0) target = $region36
            $region35: #{tpu_custom_call.1} parent=27 // pred_region
              %s169 = ssub.s32 16, 1
              loop: start=0, step=1, limit=1
              $region37: #{tpu_custom_call.1} parent=35 // loop_pre_header
                _
              $region38: #{tpu_custom_call.1} parent=35 // loop_header
                %s171 = sphi 0, %s175
                %p172 = scmp.ge.s32.totalorder %s171, 1
                %s176 = sphi %s161, %s161
                %s177 = sphi %s159, %s159
              $region39: #{tpu_custom_call.1} parent=35 // loop_header_branch
                %174 = sbr.rel (%p172) target = $region43
              $region40: #{tpu_custom_call.1} parent=35 // loop_body
                %v178 = vld [vmem:[%s176] sm:%s169]
                %179 = vst [vmem:[%s177] sm:%s169] %v178
                %v180 = vld [vmem:[%s176 + $0xc] sm:%s169]
                %181 = vst [vmem:[%s177 + $0x4] sm:%s169] %v180
                %v182 = vld [vmem:[%s176 + $0x18] sm:%s169]
                %183 = vst [vmem:[%s177 + $0x8] sm:%s169] %v182
                %v184 = vld [vmem:[%s176 + $0x24] sm:%s169]
                %185 = vst [vmem:[%s177 + $0xc] sm:%s169] %v184
              $region41: #{tpu_custom_call.1} parent=35 // loop_footer
                %s175 = sadd.s32 1, %s171
              $region42: #{tpu_custom_call.1} parent=35 // loop_footer_branch
                %170 = sbr.rel target = $region38
              $region43: #{tpu_custom_call.1} parent=35 // loop_exit
                _
            $region36: #{tpu_custom_call.1} parent=27 // pred_fallthru
              _
          $region28: #{tpu_custom_call.1} parent=23 // pred_fallthru
            _
          %214 = vnop
        $region24: #{tpu_custom_call.1} parent=15 // pred_fallthru
          _
        // Predicated region
        $region62: #{tpu_custom_call.1} parent=15 // pred_check
          %p215 = pneg %p93
        $region63: #{tpu_custom_call.1} parent=15 // pred_check_branch
          %217 = sbr.rel (%p215) target = $region65
        $region64: #{tpu_custom_call.1} parent=15 // pred_region
          %s218 = smul.u32 4, %s16
          %p219 = scmp.lt.s32.totalorder %s218, 7
          %s220 = scalar_select %p219, %s218, 7
          %s221 = smul.addr %s220, 8
          %s222 = scalar_lea.vmem %s2, %s221
          %s223 = smul.u32 4, %s16
        $region65: #{tpu_custom_call.1} parent=15 // pred_fallthru
          _
      $region16: #{tpu_custom_call.1} parent=5 // pred_fallthru
        _
      %p224 = scmp.le.s32.totalorder 1, %s9
      %p225 = scmp.lt.s32.totalorder %s9, 7
      %p226 = pnand %p224, %p225
      %p227 = pneg %p226
      // Predicated region
      $region66: #{tpu_custom_call.1} parent=5 // pred_check
        _
      $region67: #{tpu_custom_call.1} parent=5 // pred_check_branch
        %229 = sbr.rel (%p226) target = $region69
      $region68: #{tpu_custom_call.1} parent=5 // pred_region
        %s230 = ssub.s32 %s9, 1
        %s231 = sand.u32 %s60, 1
        %s232 = sand.u32 %s60, 1
        %s233 = smul.addr %s232, 16
        %s234 = scalar_lea.vmem [#allocation5], %s233
        // Predicated region
        $region70: #{tpu_custom_call.1} parent=68 // pred_check
          %p235 = pneg %p73
        $region71: #{tpu_custom_call.1} parent=68 // pred_check_branch
          %237 = sbr.rel (%p235) target = $region73
        $region72: #{tpu_custom_call.1} parent=68 // pred_region
          _
        $region73: #{tpu_custom_call.1} parent=68 // pred_fallthru
          _
        %s238 = smul.u32 4, %s18
        %p239 = scmp.lt.s32.totalorder %s238, 7
        %s240 = scalar_select %p239, %s238, 7
        %s241 = smul.addr %s240, 4
        %s242 = scalar_lea.vmem %s0, %s241
        %p243 = pneg %p47
        %p244 = pneg %p44
        %s245 = sand.u32 %s60, 1
        %s246 = sand.u32 %s60, 1
        %s247 = smul.addr %s246, 16
        %s248 = scalar_lea.vmem [#allocation5], %s247
        %p249 = pneg %p73
        %p250 = pneg %p70
        %s251 = smul.u32 4, %s18
        %p252 = scmp.lt.s32.totalorder %s251, 7
        %s253 = scalar_select %p252, %s251, 7
        %s254 = smul.addr %s253, 8
        %s255 = scalar_lea.vmem %s2, %s254
        %p256 = pneg %p99
        %p257 = pneg %p96
        %p258 = pneg %p125
        %p259 = pneg %p122
        %s260 = smul.u32 4, %s18
        %p261 = scmp.lt.s32.totalorder %s260, 7
        %s262 = scalar_select %p261, %s260, 7
        %s263 = smul.addr %s262, 8
        %s264 = scalar_lea.vmem %s3, %s263
        %s265 = smul.u32 4, %s18
        %p266 = scmp.lt.s32.totalorder %s265, 7
        %s267 = scalar_select %p266, %s265, 7
        %s268 = smul.addr %s267, 4
        %s269 = scalar_lea.vmem %s0, %s268
        %s270 = smul.u32 4, %s18
        %s271 = smul.u32 4, %s18
        %p272 = scmp.lt.s32.totalorder %s271, 7
        %s273 = scalar_select %p272, %s271, 7
        %s274 = smul.addr %s273, 8
        %s275 = scalar_lea.vmem %s2, %s274
        %s276 = smul.u32 4, %s18
        %s277 = smul.u32 4, %s18
        %p278 = scmp.lt.s32.totalorder %s277, 7
        %s279 = scalar_select %p278, %s277, 7
        %s280 = smul.addr %s279, 8
        %s281 = scalar_lea.vmem %s3, %s280
        %s282 = smul.u32 4, %s18
        %p284 = scmp.eq.s32.totalorder %s19, 0
        // Predicated region
        $region74: #{tpu_custom_call.1} parent=68 // pred_check
          %p285 = pneg %p284
        $region75: #{tpu_custom_call.1} parent=68 // pred_check_branch
          %287 = sbr.rel (%p285) target = $region77
        $region76: #{tpu_custom_call.1} parent=68 // pred_region
          %vm288 = vcmask 7168
          %289 = vst.msk [vmem:[#allocation2] sm:$0xff] %vm288, -1e+30
          %290 = vst.msk [vmem:[#allocation2 + $0x8] sm:$0xff] %vm288, -1e+30
          %291 = vst.msk [vmem:[#allocation2 + $0x10] sm:$0xff] %vm288, -1e+30
          %292 = vst.msk [vmem:[#allocation2 + $0x18] sm:$0xff] %vm288, -1e+30
          %293 = vst.msk [vmem:[#allocation3] sm:$0xff] %vm288, 0.0
          %294 = vst.msk [vmem:[#allocation3 + $0x8] sm:$0xff] %vm288, 0.0
          %295 = vst.msk [vmem:[#allocation3 + $0x10] sm:$0xff] %vm288, 0.0
          %296 = vst.msk [vmem:[#allocation3 + $0x18] sm:$0xff] %vm288, 0.0
          %297 = vst.msk [vmem:[#allocation4] sm:$0xff] %vm288, 0.0
          %298 = vst.msk [vmem:[#allocation4 + $0x8] sm:$0xff] %vm288, 0.0
          %299 = vst.msk [vmem:[#allocation4 + $0x10] sm:$0xff] %vm288, 0.0
          %300 = vst.msk [vmem:[#allocation4 + $0x18] sm:$0xff] %vm288, 0.0
        $region77: #{tpu_custom_call.1} parent=68 // pred_fallthru
          _
        %v301 = vld [vmem:[%s269] sm:$0xf]
        %v302 = vld [vmem:[%s269 + $0x4] sm:$0xf]
        %v303 = vld [vmem:[%s269 + $0x8] sm:$0xf]
        %v304 = vld [vmem:[%s269 + $0xc] sm:$0xf]
        %v305 = vld [vmem:[%s234] sm:$0xf]
        %v306 = vld [vmem:[%s234 + $0x4] sm:$0xf]
        %v307 = vld [vmem:[%s234 + $0x8] sm:$0xf]
        %v308 = vld [vmem:[%s234 + $0xc] sm:$0xf]
        %v313 = vunpack.c.l.b16 %v301
        %v314 = vunpack.c.l.b16 %v302
        %v315 = vunpack.c.l.b16 %v303
        %v316 = vunpack.c.l.b16 %v304
        %v317 = vpack.c.b16 %v314, %v313
        %v318 = vpack.c.b16 %v316, %v315
        %v323 = vunpack.c.l.b16 %v305
        %v324 = vunpack.c.l.b16 %v306
        %v325 = vunpack.c.l.b16 %v307
        %v326 = vunpack.c.l.b16 %v308
        %v327 = vpack.c.b16 %v324, %v323
        %v328 = vpack.c.b16 %v326, %v325
        %vm331 = vcmask 261120
        %v333 = vsel %vm331, %v317, 0
        %v336 = vsel %vm331, %v318, 0
        %338 = vmatpush.bf16.msra.mxu0 0
        %339 = vmatpush.bf16.msra.mxu0 0
        %340 = vmatpush.bf16.msra.mxu0 0
        %341 = vmatpush.bf16.msra.mxu0 0
        %342 = vmatpush.bf16.msra.mxu0 0
        %343 = vmatpush.bf16.msra.mxu0 0
        %344 = vmatpush.bf16.msra.mxu0 %v328
        %345 = vmatpush.bf16.msra.mxu0 %v327
        %346 = vmatmul.bf16.gmra.mxu0 %v333
        %v347 = vpop.f32.mrf.mxu0
        %v348 = vadd.f32 0.0, %v347
        %v349 = vpop.f32.mrf.mxu0
        %v350 = vadd.f32 0.0, %v349
        %351 = vmatmul.bf16.gmra.mxu0 %v336
        %v352 = vpop.f32.mrf.mxu0
        %v353 = vadd.f32 0.0, %v352
        %v354 = vpop.f32.mrf.mxu0
        %v355 = vadd.f32 0.0, %v354
        %356 = vdwg.mxu0
        %v357 = vlaneseq
        %v358 = vand.u32 %v357, 127
        %s359 = smul.u32 %s19, 128
        %v360 = vstv %s359
        %v361 = vadd.s32 %v358, %v360
        %vm362 = vcmp.lt.s32.totalorder %v361, 320
        %v363 = vsel %vm362, 1, 0
        %vm364 = vcmp.eq.s32.totalorder %v363, 1
        %v365 = vsel %vm364, %v348, -1e+30
        %v366 = vsel %vm364, %v350, -1e+30
        %v367 = vsel %vm364, %v353, -1e+30
        %v368 = vsel %vm364, %v355, -1e+30
        %v369 = vld [vmem:[#allocation2] sm:$0xff]
        %v370 = vld [vmem:[#allocation2 + $0x8] sm:$0xff]
        %v371 = vld [vmem:[#allocation2 + $0x10] sm:$0xff]
        %v372 = vld [vmem:[#allocation2 + $0x18] sm:$0xff]
        %373 = vmax.xlane.f32.xlu0 %v365
        %v374 = vpop.xlane.xlu0 %373
        %375 = vmax.xlane.f32.xlu0 %v366
        %v376 = vpop.xlane.xlu0 %375
        %377 = vmax.xlane.f32.xlu0 %v367
        %v378 = vpop.xlane.xlu0 %377
        %379 = vmax.xlane.f32.xlu0 %v368
        %v380 = vpop.xlane.xlu0 %379
        %v381 = vmax.f32 %v369, %v374
        %v382 = vmax.f32 %v370, %v376
        %v383 = vmax.f32 %v371, %v378
        %v384 = vmax.f32 %v372, %v380
        %v385 = vsub.f32 %v369, %v381
        %v386 = vsub.f32 %v370, %v382
        %v387 = vsub.f32 %v371, %v383
        %v388 = vsub.f32 %v372, %v384
        %v389 = vmul.f32 %v385, 1.442695
        %v390 = vpow.pop %v389
        %v391 = vmul.f32 %v386, 1.442695
        %v392 = vpow.pop %v391
        %v393 = vmul.f32 %v387, 1.442695
        %v394 = vpow.pop %v393
        %v395 = vmul.f32 %v388, 1.442695
        %v396 = vpow.pop %v395
        %v397 = vld [vmem:[#allocation3] sm:$0xff]
        %v398 = vld [vmem:[#allocation3 + $0x8] sm:$0xff]
        %v399 = vld [vmem:[#allocation3 + $0x10] sm:$0xff]
        %v400 = vld [vmem:[#allocation3 + $0x18] sm:$0xff]
        %v401 = vmul.f32 %v390, %v397
        %v402 = vmul.f32 %v392, %v398
        %v403 = vmul.f32 %v394, %v399
        %v404 = vmul.f32 %v396, %v400
        %406 = vset.pattern.permute.xlu0 0
        %407 = vperm.xlu0 %406, %v381
        %v408 = vpop.permute.xlu0 %407
        %411 = vset.pattern.permute.xlu0 0
        %412 = vperm.xlu0 %411, %v382
        %v413 = vpop.permute.xlu0 %412
        %416 = vset.pattern.permute.xlu0 0
        %417 = vperm.xlu0 %416, %v383
        %v418 = vpop.permute.xlu0 %417
        %421 = vset.pattern.permute.xlu0 0
        %422 = vperm.xlu0 %421, %v384
        %v423 = vpop.permute.xlu0 %422
        %v425 = vsub.f32 %v365, %v408
        %v426 = vsub.f32 %v366, %v413
        %v427 = vsub.f32 %v367, %v418
        %v428 = vsub.f32 %v368, %v423
        %v429 = vmul.f32 %v425, 1.442695
        %v430 = vpow.pop %v429
        %v431 = vmul.f32 %v426, 1.442695
        %v432 = vpow.pop %v431
        %v433 = vmul.f32 %v427, 1.442695
        %v434 = vpow.pop %v433
        %v435 = vmul.f32 %v428, 1.442695
        %v436 = vpow.pop %v435
        %437 = vadd.xlane.f32.xlu0 %v430
        %v438 = vpop.xlane.xlu0 %437
        %439 = vadd.xlane.f32.xlu0 %v432
        %v440 = vpop.xlane.xlu0 %439
        %441 = vadd.xlane.f32.xlu0 %v434
        %v442 = vpop.xlane.xlu0 %441
        %443 = vadd.xlane.f32.xlu0 %v436
        %v444 = vpop.xlane.xlu0 %443
        %v445 = vadd.f32 %v401, %v438
        %v446 = vadd.f32 %v402, %v440
        %v447 = vadd.f32 %v403, %v442
        %v448 = vadd.f32 %v404, %v444
        %vm449 = vcmask 7168
        %450 = vst.msk [vmem:[#allocation3] sm:$0xff] %vm449, %v445
        %451 = vst.msk [vmem:[#allocation3 + $0x8] sm:$0xff] %vm449, %v446
        %452 = vst.msk [vmem:[#allocation3 + $0x10] sm:$0xff] %vm449, %v447
        %453 = vst.msk [vmem:[#allocation3 + $0x18] sm:$0xff] %vm449, %v448
        %454 = vst.msk [vmem:[#allocation2] sm:$0xff] %vm449, %v381
        %455 = vst.msk [vmem:[#allocation2 + $0x8] sm:$0xff] %vm449, %v382
        %456 = vst.msk [vmem:[#allocation2 + $0x10] sm:$0xff] %vm449, %v383
        %457 = vst.msk [vmem:[#allocation2 + $0x18] sm:$0xff] %vm449, %v384
        %v458 = vld [vmem:[%s275] sm:$0xff]
        %v459 = vld [vmem:[%s275 + $0x8] sm:$0xff]
        %v460 = vld [vmem:[%s275 + $0x10] sm:$0xff]
        %v461 = vld [vmem:[%s275 + $0x18] sm:$0xff]
        %462 = vset.pattern.permute.xlu0 0
        %463 = vperm.xlu0 %462, %v458
        %v464 = vpop.permute.xlu0 %463
        %465 = vset.pattern.permute.xlu0 0
        %466 = vperm.xlu0 %465, %v459
        %v467 = vpop.permute.xlu0 %466
        %468 = vset.pattern.permute.xlu0 0
        %469 = vperm.xlu0 %468, %v460
        %v470 = vpop.permute.xlu0 %469
        %471 = vset.pattern.permute.xlu0 0
        %472 = vperm.xlu0 %471, %v461
        %v473 = vpop.permute.xlu0 %472
        %vm474 = vcmp.eq.s32.totalorder %v361, %v464
        %vm475 = vcmp.eq.s32.totalorder %v361, %v467
        %vm476 = vcmp.eq.s32.totalorder %v361, %v470
        %vm477 = vcmp.eq.s32.totalorder %v361, %v473
        %v478 = vsel %vm474, 1, 0
        %v479 = vsel %vm475, 1, 0
        %v480 = vsel %vm476, 1, 0
        %v481 = vsel %vm477, 1, 0
        %v482 = vcvt.s32.f32 %v478
        %v483 = vcvt.s32.f32 %v479
        %v484 = vcvt.s32.f32 %v480
        %v485 = vcvt.s32.f32 %v481
        %486 = vset.pattern.permute.xlu0 1
        %487 = vperm.xlu0 %486, %v458
        %v488 = vpop.permute.xlu0 %487
        %489 = vset.pattern.permute.xlu0 1
        %490 = vperm.xlu0 %489, %v459
        %v491 = vpop.permute.xlu0 %490
        %492 = vset.pattern.permute.xlu0 1
        %493 = vperm.xlu0 %492, %v460
        %v494 = vpop.permute.xlu0 %493
        %495 = vset.pattern.permute.xlu0 1
        %496 = vperm.xlu0 %495, %v461
        %v497 = vpop.permute.xlu0 %496
        %vm498 = vcmp.eq.s32.totalorder %v361, %v488
        %vm499 = vcmp.eq.s32.totalorder %v361, %v491
        %vm500 = vcmp.eq.s32.totalorder %v361, %v494
        %vm501 = vcmp.eq.s32.totalorder %v361, %v497
        %v502 = vsel %vm498, 1, 0
        %v503 = vsel %vm499, 1, 0
        %v504 = vsel %vm500, 1, 0
        %v505 = vsel %vm501, 1, 0
        %v506 = vcvt.s32.f32 %v502
        %v507 = vcvt.s32.f32 %v503
        %v508 = vcvt.s32.f32 %v504
        %v509 = vcvt.s32.f32 %v505
        %v510 = vadd.f32 %v482, %v506
        %v511 = vadd.f32 %v483, %v507
        %v512 = vadd.f32 %v484, %v508
        %v513 = vadd.f32 %v485, %v509
        %514 = vset.pattern.permute.xlu0 2
        %515 = vperm.xlu0 %514, %v458
        %v516 = vpop.permute.xlu0 %515
        %517 = vset.pattern.permute.xlu0 2
        %518 = vperm.xlu0 %517, %v459
        %v519 = vpop.permute.xlu0 %518
        %520 = vset.pattern.permute.xlu0 2
        %521 = vperm.xlu0 %520, %v460
        %v522 = vpop.permute.xlu0 %521
        %523 = vset.pattern.permute.xlu0 2
        %524 = vperm.xlu0 %523, %v461
        %v525 = vpop.permute.xlu0 %524
        %vm526 = vcmp.eq.s32.totalorder %v361, %v516
        %vm527 = vcmp.eq.s32.totalorder %v361, %v519
        %vm528 = vcmp.eq.s32.totalorder %v361, %v522
        %vm529 = vcmp.eq.s32.totalorder %v361, %v525
        %v530 = vsel %vm526, 1, 0
        %v531 = vsel %vm527, 1, 0
        %v532 = vsel %vm528, 1, 0
        %v533 = vsel %vm529, 1, 0
        %v534 = vcvt.s32.f32 %v530
        %v535 = vcvt.s32.f32 %v531
        %v536 = vcvt.s32.f32 %v532
        %v537 = vcvt.s32.f32 %v533
        %v538 = vadd.f32 %v510, %v534
        %v539 = vadd.f32 %v511, %v535
        %v540 = vadd.f32 %v512, %v536
        %v541 = vadd.f32 %v513, %v537
        %542 = vset.pattern.permute.xlu0 3
        %543 = vperm.xlu0 %542, %v458
        %v544 = vpop.permute.xlu0 %543
        %545 = vset.pattern.permute.xlu0 3
        %546 = vperm.xlu0 %545, %v459
        %v547 = vpop.permute.xlu0 %546
        %548 = vset.pattern.permute.xlu0 3
        %549 = vperm.xlu0 %548, %v460
        %v550 = vpop.permute.xlu0 %549
        %551 = vset.pattern.permute.xlu0 3
        %552 = vperm.xlu0 %551, %v461
        %v553 = vpop.permute.xlu0 %552
        %vm554 = vcmp.eq.s32.totalorder %v361, %v544
        %vm555 = vcmp.eq.s32.totalorder %v361, %v547
        %vm556 = vcmp.eq.s32.totalorder %v361, %v550
        %vm557 = vcmp.eq.s32.totalorder %v361, %v553
        %v558 = vsel %vm554, 1, 0
        %v559 = vsel %vm555, 1, 0
        %v560 = vsel %vm556, 1, 0
        %v561 = vsel %vm557, 1, 0
        %v562 = vcvt.s32.f32 %v558
        %v563 = vcvt.s32.f32 %v559
        %v564 = vcvt.s32.f32 %v560
        %v565 = vcvt.s32.f32 %v561
        %v566 = vadd.f32 %v538, %v562
        %v567 = vadd.f32 %v539, %v563
        %v568 = vadd.f32 %v540, %v564
        %v569 = vadd.f32 %v541, %v565
        %v570 = vld [vmem:[#allocation4] sm:$0xff]
        %v571 = vld [vmem:[#allocation4 + $0x8] sm:$0xff]
        %v572 = vld [vmem:[#allocation4 + $0x10] sm:$0xff]
        %v573 = vld [vmem:[#allocation4 + $0x18] sm:$0xff]
        %v574 = vmul.f32 %v365, %v566
        %v575 = vmul.f32 %v366, %v567
        %v576 = vmul.f32 %v367, %v568
        %v577 = vmul.f32 %v368, %v569
        %578 = vadd.xlane.f32.xlu0 %v574
        %v579 = vpop.xlane.xlu0 %578
        %580 = vadd.xlane.f32.xlu0 %v575
        %v581 = vpop.xlane.xlu0 %580
        %582 = vadd.xlane.f32.xlu0 %v576
        %v583 = vpop.xlane.xlu0 %582
        %584 = vadd.xlane.f32.xlu0 %v577
        %v585 = vpop.xlane.xlu0 %584
        %v586 = vadd.f32 %v570, %v579
        %v587 = vadd.f32 %v571, %v581
        %v588 = vadd.f32 %v572, %v583
        %v589 = vadd.f32 %v573, %v585
        %590 = vst.msk [vmem:[#allocation4] sm:$0xff] %vm449, %v586
        %591 = vst.msk [vmem:[#allocation4 + $0x8] sm:$0xff] %vm449, %v587
        %592 = vst.msk [vmem:[#allocation4 + $0x10] sm:$0xff] %vm449, %v588
        %593 = vst.msk [vmem:[#allocation4 + $0x18] sm:$0xff] %vm449, %v589
        %p594 = scmp.eq.s32.totalorder %s19, 2
        // Predicated region
        $region78: #{tpu_custom_call.1} parent=68 // pred_check
          %p595 = pneg %p594
        $region79: #{tpu_custom_call.1} parent=68 // pred_check_branch
          %597 = sbr.rel (%p595) target = $region81
        $region80: #{tpu_custom_call.1} parent=68 // pred_region
          %v598 = vld [vmem:[#allocation2] sm:$0xff]
          %v599 = vld [vmem:[#allocation2 + $0x8] sm:$0xff]
          %v600 = vld [vmem:[#allocation2 + $0x10] sm:$0xff]
          %v601 = vld [vmem:[#allocation2 + $0x18] sm:$0xff]
          %v602 = vld [vmem:[#allocation3] sm:$0xff]
          %v603 = vld [vmem:[#allocation3 + $0x8] sm:$0xff]
          %v604 = vld [vmem:[#allocation3 + $0x10] sm:$0xff]
          %v605 = vld [vmem:[#allocation3 + $0x18] sm:$0xff]
          %v606 = vlog2.pop %v602
          %v607 = vmul.f32 %v606, 0.6931472
          %v608 = vlog2.pop %v603
          %v609 = vmul.f32 %v608, 0.6931472
          %v610 = vlog2.pop %v604
          %v611 = vmul.f32 %v610, 0.6931472
          %v612 = vlog2.pop %v605
          %v613 = vmul.f32 %v612, 0.6931472
          %v614 = vadd.f32 %v598, %v607
          %v615 = vadd.f32 %v599, %v609
          %v616 = vadd.f32 %v600, %v611
          %v617 = vadd.f32 %v601, %v613
          %v618 = vld [vmem:[%s275] sm:$0xff]
          %v619 = vld [vmem:[%s275 + $0x8] sm:$0xff]
          %v620 = vld [vmem:[%s275 + $0x10] sm:$0xff]
          %v621 = vld [vmem:[%s275 + $0x18] sm:$0xff]
          %vm622 = vcmp.ge.s32.totalorder %v618, 0
          %vm623 = vcmp.ge.s32.totalorder %v619, 0
          %vm624 = vcmp.ge.s32.totalorder %v620, 0
          %vm625 = vcmp.ge.s32.totalorder %v621, 0
          %v626 = vsel %vm622, 1, 0
          %v627 = vsel %vm623, 1, 0
          %v628 = vsel %vm624, 1, 0
          %v629 = vsel %vm625, 1, 0
          %v630 = vcvt.s32.f32 %v626
          %v631 = vcvt.s32.f32 %v627
          %v632 = vcvt.s32.f32 %v628
          %v633 = vcvt.s32.f32 %v629
          %vm634 = vcmask 31744
          %v635 = vsel %vm634, %v630, 0.0
          %636 = vadd.xlane.f32.xlu0 %v635
          %v637 = vpop.xlane.xlu0 %636
          %v638 = vsel %vm634, %v631, 0.0
          %639 = vadd.xlane.f32.xlu0 %v638
          %v640 = vpop.xlane.xlu0 %639
          %v641 = vsel %vm634, %v632, 0.0
          %642 = vadd.xlane.f32.xlu0 %v641
          %v643 = vpop.xlane.xlu0 %642
          %v644 = vsel %vm634, %v633, 0.0
          %645 = vadd.xlane.f32.xlu0 %v644
          %v646 = vpop.xlane.xlu0 %645
          %v647 = vld [vmem:[#allocation4] sm:$0xff]
          %v648 = vld [vmem:[#allocation4 + $0x8] sm:$0xff]
          %v649 = vld [vmem:[#allocation4 + $0x10] sm:$0xff]
          %v650 = vld [vmem:[#allocation4 + $0x18] sm:$0xff]
          %v651 = vmul.f32 %v614, %v637
          %v652 = vmul.f32 %v615, %v640
          %v653 = vmul.f32 %v616, %v643
          %v654 = vmul.f32 %v617, %v646
          %v655 = vsub.f32 %v647, %v651
          %v656 = vsub.f32 %v648, %v652
          %v657 = vsub.f32 %v649, %v653
          %v658 = vsub.f32 %v650, %v654
          %659 = vst.msk [vmem:[%s281] sm:$0xff] %vm449, %v655
          %660 = vst.msk [vmem:[%s281 + $0x8] sm:$0xff] %vm449, %v656
          %661 = vst.msk [vmem:[%s281 + $0x10] sm:$0xff] %vm449, %v657
          %662 = vst.msk [vmem:[%s281 + $0x18] sm:$0xff] %vm449, %v658
        $region81: #{tpu_custom_call.1} parent=68 // pred_fallthru
          _
        %s663 = smul.u32 4, %s18
        %p664 = scmp.lt.s32.totalorder %s663, 7
        %s665 = scalar_select %p664, %s663, 7
        %s666 = smul.addr %s665, 8
        %s667 = scalar_lea.vmem %s3, %s666
        // Predicated region
        $region82: #{tpu_custom_call.1} parent=68 // pred_check
          %p668 = pneg %p122
        $region83: #{tpu_custom_call.1} parent=68 // pred_check_branch
          %670 = sbr.rel (%p668) target = $region85
        $region84: #{tpu_custom_call.1} parent=68 // pred_region
          %s671 = smul.u32 4, %s18
        $region85: #{tpu_custom_call.1} parent=68 // pred_fallthru
          _
      $region69: #{tpu_custom_call.1} parent=5 // pred_fallthru
        _
      %p672 = scmp.le.s32.totalorder 2, %s9
      // Predicated region
      $region86: #{tpu_custom_call.1} parent=5 // pred_check
        %p673 = pneg %p672
      $region87: #{tpu_custom_call.1} parent=5 // pred_check_branch
        %675 = sbr.rel (%p673) target = $region89
      $region88: #{tpu_custom_call.1} parent=5 // pred_region
        %s676 = ssub.s32 %s9, 2
        // Predicated region
        $region90: #{tpu_custom_call.1} parent=88 // pred_check
          %p677 = pneg %p128
        $region91: #{tpu_custom_call.1} parent=88 // pred_check_branch
          %679 = sbr.rel (%p677) target = $region93
        $region92: #{tpu_custom_call.1} parent=88 // pred_region
          %s680 = smul.u32 4, %s20
          %p681 = scmp.lt.s32.totalorder %s680, 7
          %s682 = scalar_select %p681, %s680, 7
          %s683 = smul.addr %s682, 8
          %s684 = scalar_lea.vmem %s3, %s683
        $region93: #{tpu_custom_call.1} parent=88 // pred_fallthru
          _
      $region89: #{tpu_custom_call.1} parent=5 // pred_fallthru
        _
    $region6: #{tpu_custom_call.1} parent=1 // loop_footer
      %s13 = sadd.s32 1, %s9
    $region7: #{tpu_custom_call.1} parent=1 // loop_footer_branch
      %8 = sbr.rel target = $region3
    $region8: #{tpu_custom_call.1} parent=1 // loop_exit
      _

</llo_original>
